<compile_context>
chip_gen: v7x
topology: tpu7x:2x2x1
jax: 0.10.0
libtpu: 0.0.40
codegen_flags: <defaults>
</compile_context>

<pallas_src>
import functools

import jax
import jax.numpy as jnp
from jax.experimental import pallas as pl
from jax.experimental.pallas import tpu as pltpu

WEIGHT = {
    'Background': 1e-10, 'BrainStem': 0.007, 'Chiasm': 0.3296,
    'Mandible': 0.0046, 'OpticNerve_L': 0.2619, 'OpticNerve_R': 0.3035,
    'Parotid_L': 0.0068, 'Parotid_R': 0.0065, 'Submandibular_L': 0.0374,
    'Submandibular_R': 0.0426,
}
NUM_CLASSES = len(WEIGHT)


def _wce_kernel(x_ref, t_ref, w_ref, nll_ref, wsum_ref, *,
                hw, bhw, jb, needs_mask, compute_dtype):
    """Per (batch item, stripe, pixel block): accumulate lane-wise partial sums
    of w[y_i]*nll_i and w[y_i] into resident per-(batch,stripe) output blocks."""
    j = pl.program_id(2)

    @pl.when(j == 0)
    def _():
        nll_ref[...] = jnp.zeros_like(nll_ref)
        wsum_ref[...] = jnp.zeros_like(wsum_ref)

    x = x_ref[0].astype(compute_dtype)        # (C, bhw) logits, classes on sublanes
    t = t_ref[0]                              # (1, bhw) int32 labels
    w = w_ref[...]                            # (C, 1)  f32 class weights

    # numerically stable log-sum-exp over the (10-sublane) class axis;
    # elementwise work in compute_dtype, reduction accumulators in f32
    m = jnp.max(x, axis=0, keepdims=True)                                  # (1, bhw)
    e = jnp.exp(x - m)                                                     # (C, bhw)
    lse = m.astype(jnp.float32) + jnp.log(
        jnp.sum(e, axis=0, keepdims=True, dtype=jnp.float32))              # (1, bhw)

    # gather logit / weight at the target class via a one-hot sublane mask
    cls = jax.lax.broadcasted_iota(jnp.int32, x.shape, 0)                  # (C, bhw)
    onehot = cls == t                                                      # (C, bhw)
    x_t = jnp.sum(jnp.where(onehot, x, 0), axis=0, keepdims=True,
                  dtype=jnp.float32)                                       # (1, bhw)
    w_b = jnp.broadcast_to(w, (x.shape[0], x.shape[1]))                    # (C, bhw) f32
    w_t = jnp.sum(jnp.where(onehot, w_b, 0.0), axis=0, keepdims=True,
                  dtype=jnp.float32)                                       # (1, bhw)

    nll = w_t * (lse - x_t)                                                # (1, bhw)

    if needs_mask:
        # Mask pixels of ragged / fully-padded blocks.  Use SELECTS on both
        # w_t and nll (the OOB lanes of the logits block are undefined, so
        # lse/x_t may be inf/NaN there; multiplying by a masked w_t would
        # produce 0*inf = NaN).
        s = pl.program_id(1)
        pix = (s * jb + j) * bhw + jax.lax.broadcasted_iota(
            jnp.int32, (1, bhw), 1)
        valid = pix < hw
        w_t = jnp.where(valid, w_t, 0.0)
        nll = jnp.where(valid, nll, 0.0)

    nll_ref[0] += nll
    wsum_ref[0] += w_t


@functools.partial(jax.jit,
                   static_argnames=("block_hw", "stripes", "compute_dtype"))
def weighted_cross_entropy(logits_nchw, target_nhw, class_weight, *,
                           block_hw=32768, stripes=2,
                           compute_dtype=jnp.float32):
    """logits_nchw: (N, C, H, W) float (f32 or bf16, dtype passed through);
    target_nhw: (N, H, W) int labels; class_weight: (C,) float."""
    n, c, h, w = logits_nchw.shape
    hw = h * w
    assert block_hw % 128 == 0, "block_hw must be a multiple of 128"

    # native layout — free reshapes, no transpose / pad / dtype cast in HBM
    x = logits_nchw.reshape(n, c, hw)
    t = target_nhw.reshape(n, 1, hw).astype(jnp.int32)
    wvec = class_weight.astype(jnp.float32).reshape(c, 1)

    # pixel block: full dim if it fits, else a (multiple-of-128) block
    bhw = hw if hw <= block_hw else block_hw
    num_blocks = pl.cdiv(hw, bhw)

    # independent pixel stripes (parallel axis — keeps both v7x TCs busy at
    # small N); never more stripes than real blocks.
    s_eff = max(1, min(stripes, num_blocks))
    jb = pl.cdiv(num_blocks, s_eff)                  # pixel blocks per stripe
    needs_mask = (s_eff * jb * bhw != hw)            # static: ragged or padded
    last_blk = num_blocks - 1

    def x_map(i, s, j):
        return (i, 0, jnp.minimum(s * jb + j, last_blk))   # clamp padded blocks

    def t_map(i, s, j):
        return (i, 0, jnp.minimum(s * jb + j, last_blk))

    kernel = functools.partial(_wce_kernel, hw=hw, bhw=bhw, jb=jb,
                               needs_mask=needs_mask,
                               compute_dtype=compute_dtype)

    # scoped-VMEM budget: double-buffered inputs + resident/double-buffered
    # outputs + slack (guards v5e's 16 MiB default when blocks are large)
    est_vmem = (2 * bhw * (c * x.dtype.itemsize + 4)     # logits + targets
                + 2 * 2 * bhw * 4                        # two f32 output blocks
                + (2 << 20))                             # compiler scratch slack
    vmem_limit = max(32 * 1024 * 1024, int(est_vmem))

    nll_part, w_part = pl.pallas_call(
        kernel,
        out_shape=(
            jax.ShapeDtypeStruct((n, s_eff, bhw), jnp.float32),
            jax.ShapeDtypeStruct((n, s_eff, bhw), jnp.float32),
        ),
        grid_spec=pltpu.PrefetchScalarGridSpec(
            num_scalar_prefetch=0,
            grid=(n, s_eff, jb),
            in_specs=[
                pl.BlockSpec((1, c, bhw), x_map),                 # logits
                pl.BlockSpec((1, 1, bhw), t_map),                 # targets
                pl.BlockSpec((c, 1), lambda i, s, j: (0, 0)),     # class weights
            ],
            out_specs=(
                pl.BlockSpec((1, 1, bhw), lambda i, s, j: (i, s, 0)),  # nll partials
                pl.BlockSpec((1, 1, bhw), lambda i, s, j: (i, s, 0)),  # weight partials
            ),
        ),
        compiler_params=pltpu.CompilerParams(
            # batch + stripe axes independent (both TCs on v7x);
            # pixel-block axis accumulates and is last.
            dimension_semantics=("parallel", "parallel", "arbitrary"),
            vmem_limit_bytes=vmem_limit,
        ),
    )(x, t, wvec)

    # tiny final cross-lane reductions + divide in plain JAX.
    # NOTE: matches PyTorch weighted-mean semantics; an all-Background batch
    # gives a ~1e-10-scaled denominator (numerically touchy, but per spec).
    return jnp.sum(nll_part) / jnp.sum(w_part)


def _reference(logits_nchw, target_nhw, class_weight):
    n, c, h, w = logits_nchw.shape
    x = jnp.transpose(logits_nchw, (0, 2, 3, 1)).reshape(-1, c).astype(jnp.float32)
    t = target_nhw.reshape(-1)
    logp = jax.nn.log_softmax(x, axis=-1)
    nll = -jnp.take_along_axis(logp, t[:, None], axis=-1)[:, 0]
    wt = class_weight[t]
    return jnp.sum(wt * nll) / jnp.sum(wt)


if __name__ == "__main__":
    key = jax.random.PRNGKey(0)
    class_weight = jnp.asarray(list(WEIGHT.values()), dtype=jnp.float32)

    # Case 1: small, single pixel block (N, C, H, W) = (2, 10, 16, 16)
    k1, k2, k3, k4 = jax.random.split(key, 4)
    N, C, H, W = 2, NUM_CLASSES, 16, 16
    logits = jax.random.normal(k1, (N, C, H, W), dtype=jnp.float32)
    target = jax.random.randint(k2, (N, H, W), 0, C, dtype=jnp.int32)

    loss = jax.block_until_ready(
        weighted_cross_entropy(logits, target, class_weight))
    ref = _reference(logits, target, class_weight)
    assert jnp.allclose(loss, ref, rtol=1e-5, atol=1e-5), (loss, ref)

    # Case 2: multi-block + 2 stripes + ragged tail (exercises clamp/mask path)
    H2, W2 = 48, 48                                  # hw = 2304, blocks of 512
    logits2 = jax.random.normal(k3, (N, C, H2, W2), dtype=jnp.float32)
    target2 = jax.random.randint(k4, (N, H2, W2), 0, C, dtype=jnp.int32)

    loss2 = jax.block_until_ready(
        weighted_cross_entropy(logits2, target2, class_weight,
                               block_hw=512, stripes=2))
    ref2 = _reference(logits2, target2, class_weight)
    assert jnp.allclose(loss2, ref2, rtol=1e-5, atol=1e-5), (loss2, ref2)

    print("KERNEL_OK")
</pallas_src>

<mosaic_0001>
module attributes {stable_mosaic.version = 11 : i64} {
  func.func @_wce_kernel(%arg0: i32, %arg1: i32, %arg2: i32, %arg3: memref<1x10x256xf32, #tpu.memory_space<vmem>>, %arg4: memref<1x1x256xi32, #tpu.memory_space<vmem>>, %arg5: memref<10x1xf32, #tpu.memory_space<vmem>>, %arg6: memref<1x1x256xf32, #tpu.memory_space<vmem>>, %arg7: memref<1x1x256xf32, #tpu.memory_space<vmem>>) attributes {dimension_semantics = [#tpu.dimension_semantics<parallel>, #tpu.dimension_semantics<parallel>, #tpu.dimension_semantics<arbitrary>], iteration_bounds = array<i64: 2, 1, 1>, scalar_prefetch = 0 : i64, scratch_operands = 0 : i64, tpu.core_type = #tpu.core_type<tc>, window_params = [{transform_indices = @transform_0, window_bounds = array<i64: 1, 10, 256>}, {transform_indices = @transform_1, window_bounds = array<i64: 1, 1, 256>}, {pipeline_mode = #tpu.pipeline_mode<synchronous>, transform_indices = @transform_2, window_bounds = array<i64: 10, 1>}, {transform_indices = @transform_3, window_bounds = array<i64: 1, 1, 256>}, {transform_indices = @transform_4, window_bounds = array<i64: 1, 1, 256>}]} {
    %c0_i32 = arith.constant 0 : i32
    %0 = arith.cmpi eq, %arg2, %c0_i32 : i32
    %1 = arith.extui %0 : i1 to i32
    %c0_i32_0 = arith.constant 0 : i32
    %2 = arith.cmpi ne, %1, %c0_i32_0 : i32
    scf.if %2 {
      %cst_25 = arith.constant 0.000000e+00 : f32
      %45 = vector.broadcast %cst_25 : f32 to vector<1x1x256xf32>
      %c0_26 = arith.constant 0 : index
      %c0_27 = arith.constant 0 : index
      %c0_28 = arith.constant 0 : index
      %46 = vector.load %arg6[%c0_26, %c0_27, %c0_28] : memref<1x1x256xf32, #tpu.memory_space<vmem>>, vector<1x1x256xf32>
      tpu.vector_store %arg6[%c0_26, %c0_27, %c0_28], %45 {strides = array<i32>} : memref<1x1x256xf32, #tpu.memory_space<vmem>>, vector<1x1x256xf32>,
      %cst_29 = arith.constant 0.000000e+00 : f32
      %47 = vector.broadcast %cst_29 : f32 to vector<1x1x256xf32>
      %c0_30 = arith.constant 0 : index
      %c0_31 = arith.constant 0 : index
      %c0_32 = arith.constant 0 : index
      %48 = vector.load %arg7[%c0_30, %c0_31, %c0_32] : memref<1x1x256xf32, #tpu.memory_space<vmem>>, vector<1x1x256xf32>
      tpu.vector_store %arg7[%c0_30, %c0_31, %c0_32], %47 {strides = array<i32>} : memref<1x1x256xf32, #tpu.memory_space<vmem>>, vector<1x1x256xf32>,
    } else {
    }
    %c0 = arith.constant 0 : index
    %c0_1 = arith.constant 0 : index
    %c0_2 = arith.constant 0 : index
    %3 = vector.load %arg3[%c0, %c0_1, %c0_2] : memref<1x10x256xf32, #tpu.memory_space<vmem>>, vector<1x10x256xf32>
    %4 = vector.shape_cast %3 : vector<1x10x256xf32> to vector<10x256xf32>
    %c0_3 = arith.constant 0 : index
    %c0_4 = arith.constant 0 : index
    %c0_5 = arith.constant 0 : index
    %5 = vector.load %arg4[%c0_3, %c0_4, %c0_5] : memref<1x1x256xi32, #tpu.memory_space<vmem>>, vector<1x1x256xi32>
    %6 = vector.shape_cast %5 : vector<1x1x256xi32> to vector<1x256xi32>
    %c0_6 = arith.constant 0 : index
    %c0_7 = arith.constant 0 : index
    %7 = vector.load %arg5[%c0_6, %c0_7] : memref<10x1xf32, #tpu.memory_space<vmem>>, vector<10x1xf32>
    %cst = arith.constant dense<0xFF800000> : vector<256xf32>
    %8 = vector.multi_reduction <maximumf>, %4, %cst [0] : vector<10x256xf32> to vector<256xf32>
    %9 = vector.shape_cast %8 : vector<256xf32> to vector<1x256xf32>
    %10 = vector.broadcast %9 : vector<1x256xf32> to vector<10x256xf32>
    %11 = arith.subf %4, %10 : vector<10x256xf32>
    %12 = math.exp %11 : vector<10x256xf32>
    %cst_8 = arith.constant dense<0.000000e+00> : vector<256xf32>
    %13 = vector.multi_reduction <add>, %12, %cst_8 [0] : vector<10x256xf32> to vector<256xf32>
    %14 = vector.shape_cast %13 : vector<256xf32> to vector<1x256xf32>
    %15 = math.log %14 : vector<1x256xf32>
    %16 = arith.addf %9, %15 : vector<1x256xf32>
    %17 = tpu.iota {dimensions = array<i32: 0>} : vector<10x256xi32>
    %18 = vector.broadcast %6 : vector<1x256xi32> to vector<10x256xi32>
    %19 = arith.cmpi eq, %17, %18 : vector<10x256xi32>
    %c0_i32_9 = arith.constant 0 : i32
    %20 = arith.sitofp %c0_i32_9 : i32 to f32
    %21 = vector.broadcast %20 : f32 to vector<10x256xf32>
    %22 = arith.select %19, %4, %21 : vector<10x256xi1>, vector<10x256xf32>
    %cst_10 = arith.constant dense<0.000000e+00> : vector<256xf32>
    %23 = vector.multi_reduction <add>, %22, %cst_10 [0] : vector<10x256xf32> to vector<256xf32>
    %24 = vector.shape_cast %23 : vector<256xf32> to vector<1x256xf32>
    %25 = vector.shape_cast %7 : vector<10x1xf32> to vector<10x1xf32>
    %26 = vector.broadcast %25 : vector<10x1xf32> to vector<10x256xf32>
    %cst_11 = arith.constant 0.000000e+00 : f32
    %27 = vector.broadcast %cst_11 : f32 to vector<10x256xf32>
    %28 = arith.select %19, %26, %27 : vector<10x256xi1>, vector<10x256xf32>
    %cst_12 = arith.constant dense<0.000000e+00> : vector<256xf32>
    %29 = vector.multi_reduction <add>, %28, %cst_12 [0] : vector<10x256xf32> to vector<256xf32>
    %30 = vector.shape_cast %29 : vector<256xf32> to vector<1x256xf32>
    %31 = arith.subf %16, %24 : vector<1x256xf32>
    %32 = arith.mulf %30, %31 : vector<1x256xf32>
    %c0_13 = arith.constant 0 : index
    %c0_14 = arith.constant 0 : index
    %c0_15 = arith.constant 0 : index
    %33 = vector.load %arg6[%c0_13, %c0_14, %c0_15] : memref<1x1x256xf32, #tpu.memory_space<vmem>>, vector<1x1x256xf32>
    %34 = vector.shape_cast %33 : vector<1x1x256xf32> to vector<1x256xf32>
    %35 = arith.addf %34, %32 : vector<1x256xf32>
    %c0_16 = arith.constant 0 : index
    %c0_17 = arith.constant 0 : index
    %c0_18 = arith.constant 0 : index
    %36 = vector.load %arg6[%c0_16, %c0_17, %c0_18] : memref<1x1x256xf32, #tpu.memory_space<vmem>>, vector<1x1x256xf32>
    %37 = vector.shape_cast %36 : vector<1x1x256xf32> to vector<1x256xf32>
    %38 = vector.shape_cast %35 : vector<1x256xf32> to vector<1x1x256xf32>
    tpu.vector_store %arg6[%c0_16, %c0_17, %c0_18], %38 {strides = array<i32>} : memref<1x1x256xf32, #tpu.memory_space<vmem>>, vector<1x1x256xf32>,
    %c0_19 = arith.constant 0 : index
    %c0_20 = arith.constant 0 : index
    %c0_21 = arith.constant 0 : index
    %39 = vector.load %arg7[%c0_19, %c0_20, %c0_21] : memref<1x1x256xf32, #tpu.memory_space<vmem>>, vector<1x1x256xf32>
    %40 = vector.shape_cast %39 : vector<1x1x256xf32> to vector<1x256xf32>
    %41 = arith.addf %40, %30 : vector<1x256xf32>
    %c0_22 = arith.constant 0 : index
    %c0_23 = arith.constant 0 : index
    %c0_24 = arith.constant 0 : index
    %42 = vector.load %arg7[%c0_22, %c0_23, %c0_24] : memref<1x1x256xf32, #tpu.memory_space<vmem>>, vector<1x1x256xf32>
    %43 = vector.shape_cast %42 : vector<1x1x256xf32> to vector<1x256xf32>
    %44 = vector.shape_cast %41 : vector<1x256xf32> to vector<1x1x256xf32>
    tpu.vector_store %arg7[%c0_22, %c0_23, %c0_24], %44 {strides = array<i32>} : memref<1x1x256xf32, #tpu.memory_space<vmem>>, vector<1x1x256xf32>,
    return
  }
  func.func @transform_0(%arg0: i32, %arg1: i32, %arg2: i32) -> (i32, i32, i32) {
    %c1_i32 = arith.constant 1 : i32
    %0 = arith.muli %arg1, %c1_i32 : i32
    %1 = arith.addi %0, %arg2 : i32
    %c0_i32 = arith.constant 0 : i32
    %2 = arith.minsi %1, %c0_i32 : i32
    %c0_i32_0 = arith.constant 0 : i32
    %c0_i32_1 = arith.constant 0 : i32
    return %arg0, %c0_i32_0, %2 : i32, i32, i32
  }
  func.func @transform_1(%arg0: i32, %arg1: i32, %arg2: i32) -> (i32, i32, i32) {
    %c1_i32 = arith.constant 1 : i32
    %0 = arith.muli %arg1, %c1_i32 : i32
    %1 = arith.addi %0, %arg2 : i32
    %c0_i32 = arith.constant 0 : i32
    %2 = arith.minsi %1, %c0_i32 : i32
    %c0_i32_0 = arith.constant 0 : i32
    %c0_i32_1 = arith.constant 0 : i32
    return %arg0, %c0_i32_0, %2 : i32, i32, i32
  }
  func.func @transform_2(%arg0: i32, %arg1: i32, %arg2: i32) -> (i32, i32) {
    %c0_i32 = arith.constant 0 : i32
    %c0_i32_0 = arith.constant 0 : i32
    %c0_i32_1 = arith.constant 0 : i32
    return %c0_i32, %c0_i32_0 : i32, i32
  }
  func.func @transform_3(%arg0: i32, %arg1: i32, %arg2: i32) -> (i32, i32, i32) {
    %c0_i32 = arith.constant 0 : i32
    %c0_i32_0 = arith.constant 0 : i32
    return %arg0, %arg1, %c0_i32 : i32, i32, i32
  }
  func.func @transform_4(%arg0: i32, %arg1: i32, %arg2: i32) -> (i32, i32, i32) {
    %c0_i32 = arith.constant 0 : i32
    %c0_i32_0 = arith.constant 0 : i32
    return %arg0, %arg1, %c0_i32 : i32, i32, i32
  }
}

</mosaic_0001>

<llo_original>
// kernel: weighted_cross_entropy.1
$region0: #{weighted_cross_entropy.1}
  #allocation0 [shape = 'u32[]', space=smem, size = 0x4, offset = 0x4, fixed_abs, tag = 'smem constant byte address 0x4 - core index']
  #allocation1 [shape = 'u32[144,128]{1,0:T(1,128)}', space=vmem, size = 0x12000, scoped, tag = 'internal scratch']
  %s0 = inlined_call_operand.vmem [shape: f32[2,10,256], index: 0, kind: input, shape index: {}]
  %s1 = inlined_call_operand.vmem [shape: s32[2,1,256], index: 1, kind: input, shape index: {}]
  %s2 = inlined_call_operand.vmem [shape: f32[10,1], index: 2, kind: input, shape index: {}]
  %s3 = inlined_call_operand.vmem [shape: f32[2,1,256], index: 3, kind: output, shape index: {0}]
  %s4 = inlined_call_operand.vmem [shape: f32[2,1,256], index: 4, kind: output, shape index: {1}]
  %5 = xla_tuple %s3, %s4
  %s6 = sld [smem:[#allocation0]]
  $region57: #{weighted_cross_entropy.1} parent=0
    _
  %s8 = ssub.s32 1, %s6
  %s9 = scalar_select 0, %s8, %s6
  loop: start=0, step=1, limit=4
  $region2: #{weighted_cross_entropy.1} parent=0 // loop_pre_header
    _
  $region3: #{weighted_cross_entropy.1} parent=0 // loop_header
    %s11 = sphi 0, %s15
    %p12 = scmp.ge.s32.totalorder %s11, 4
    %s18 = sphi 0, %s37
    %s19 = sphi 0, %s33
    %s20 = sphi 0, %s29
    %s21 = sphi 0, %s18
    %s22 = sphi 0, %s19
    %s23 = sphi 0, %s20
    %s24 = sphi 0, %s21
    %s25 = sphi 0, %s22
    %s26 = sphi 0, %s23
    %s48 = sphi 0, %s50
    %s51 = sphi 0, %s48
    %s52 = sphi 0, %s51
    %s68 = sphi 0, %s52
    %s82 = sphi 0, %s84
    %s85 = sphi 0, %s82
    %s86 = sphi 0, %s85
    %s102 = sphi 0, %s86
    %s106 = sphi 0, %s106
    %s108 = sphi 0, %s106
    %s109 = sphi 0, %s108
    %s123 = sphi 0, %s109
    %s131 = sphi 0, %s133
    %s134 = sphi 0, %s131
    %s135 = sphi 0, %s134
    %s151 = sphi 0, %s135
    %s159 = sphi 0, %s161
    %s162 = sphi 0, %s159
    %s163 = sphi 0, %s162
    %s179 = sphi 0, %s163
  $region4: #{weighted_cross_entropy.1} parent=0 // loop_header_branch
    %14 = sbr.rel (%p12) target = $region8
  $region5: #{weighted_cross_entropy.1} parent=0 // loop_body
    %s16 = ssub.s32 %s11, 1
    %s17 = ssub.s32 %s11, 2
    %s27 = sadd.s32 1, %s20
    %p28 = scmp.ge.s32.totalorder %s27, 1
    %s29 = scalar_select %p28, 0, %s27
    %s30 = sadd.s32 1, %s19
    %s31 = scalar_select %p28, %s30, %s19
    %p32 = scmp.ge.s32.totalorder %s31, 1
    %s33 = scalar_select %p32, 0, %s31
    %s34 = sadd.s32 1, %s18
    %s35 = scalar_select %p32, %s34, %s18
    %p36 = scmp.ge.s32.totalorder %s35, 2
    %s37 = scalar_select %p36, 0, %s35
    %s38 = sadd.s32 %s19, %s20
    %p39 = scmp.lt.s32.totalorder %s38, 0
    %s40 = scalar_select %p39, %s38, 0
    %s41 = sadd.s32 %s33, %s29
    %p42 = scmp.lt.s32.totalorder %s41, 0
    %s43 = scalar_select %p42, %s41, 0
    %s44 = ssub.s32 %s18, %s37
    %s45 = ssub.s32 %s40, %s43
    %s46 = sor.u32 %s44, %s45
    %p47 = scmp.eq.s32.totalorder %s46, 0
    %s49 = sadd.s32 %s48, 1
    %s50 = scalar_select %p47, %s48, %s49
    %p53 = pneg %p47
    %p54 = scmp.eq.s32.totalorder %s11, 1
    %p55 = por %p53, %p54
    %p56 = scmp.ne.s32.totalorder %s48, %s51
    %p57 = scmp.eq.s32.totalorder %s11, 0
    %p58 = por %p56, %p57
    %p59 = scmp.ne.s32.totalorder %s48, %s51
    %p60 = scmp.eq.s32.totalorder %s16, 1
    %p61 = por %p59, %p60
    %p62 = scmp.ne.s32.totalorder %s51, %s52
    %p63 = scmp.eq.s32.totalorder %s16, 0
    %p64 = por %p62, %p63
    %p65 = scmp.ne.s32.totalorder %s51, %s52
    %p66 = scmp.eq.s32.totalorder %s17, 1
    %p67 = por %p65, %p66
    %p69 = scmp.ne.s32.totalorder %s52, %s68
    %p70 = scmp.eq.s32.totalorder %s17, 0
    %p71 = por %p69, %p70
    %s72 = sadd.s32 %s19, %s20
    %p73 = scmp.lt.s32.totalorder %s72, 0
    %s74 = scalar_select %p73, %s72, 0
    %s75 = sadd.s32 %s33, %s29
    %p76 = scmp.lt.s32.totalorder %s75, 0
    %s77 = scalar_select %p76, %s75, 0
    %s78 = ssub.s32 %s18, %s37
    %s79 = ssub.s32 %s74, %s77
    %s80 = sor.u32 %s78, %s79
    %p81 = scmp.eq.s32.totalorder %s80, 0
    %s83 = sadd.s32 %s82, 1
    %s84 = scalar_select %p81, %s82, %s83
    %p87 = pneg %p81
    %p88 = scmp.eq.s32.totalorder %s11, 1
    %p89 = por %p87, %p88
    %p90 = scmp.ne.s32.totalorder %s82, %s85
    %p91 = scmp.eq.s32.totalorder %s11, 0
    %p92 = por %p90, %p91
    %p93 = scmp.ne.s32.totalorder %s82, %s85
    %p94 = scmp.eq.s32.totalorder %s16, 1
    %p95 = por %p93, %p94
    %p96 = scmp.ne.s32.totalorder %s85, %s86
    %p97 = scmp.eq.s32.totalorder %s16, 0
    %p98 = por %p96, %p97
    %p99 = scmp.ne.s32.totalorder %s85, %s86
    %p100 = scmp.eq.s32.totalorder %s17, 1
    %p101 = por %p99, %p100
    %p103 = scmp.ne.s32.totalorder %s86, %s102
    %p104 = scmp.eq.s32.totalorder %s17, 0
    %p105 = por %p103, %p104
    %s107 = sadd.s32 %s106, 1
    %p110 = scmp.eq.s32.totalorder %s11, 1
    %p111 = scmp.ne.s32.totalorder %s106, %s108
    %p112 = scmp.eq.s32.totalorder %s11, 0
    %p113 = por %p111, %p112
    %p114 = scmp.ne.s32.totalorder %s106, %s108
    %p115 = scmp.eq.s32.totalorder %s16, 1
    %p116 = por %p114, %p115
    %p117 = scmp.ne.s32.totalorder %s108, %s109
    %p118 = scmp.eq.s32.totalorder %s16, 0
    %p119 = por %p117, %p118
    %p120 = scmp.ne.s32.totalorder %s108, %s109
    %p121 = scmp.eq.s32.totalorder %s17, 1
    %p122 = por %p120, %p121
    %p124 = scmp.ne.s32.totalorder %s109, %s123
    %p125 = scmp.eq.s32.totalorder %s17, 0
    %p126 = por %p124, %p125
    %s127 = ssub.s32 %s18, %s37
    %s128 = ssub.s32 %s19, %s33
    %s129 = sor.u32 %s127, %s128
    %p130 = scmp.eq.s32.totalorder %s129, 0
    %s132 = sadd.s32 %s131, 1
    %s133 = scalar_select %p130, %s131, %s132
    %p136 = pneg %p130
    %p137 = scmp.eq.s32.totalorder %s11, 1
    %p138 = por %p136, %p137
    %p139 = scmp.ne.s32.totalorder %s131, %s134
    %p140 = scmp.eq.s32.totalorder %s11, 0
    %p141 = por %p139, %p140
    %p142 = scmp.ne.s32.totalorder %s131, %s134
    %p143 = scmp.eq.s32.totalorder %s16, 1
    %p144 = por %p142, %p143
    %p145 = scmp.ne.s32.totalorder %s134, %s135
    %p146 = scmp.eq.s32.totalorder %s16, 0
    %p147 = por %p145, %p146
    %p148 = scmp.ne.s32.totalorder %s134, %s135
    %p149 = scmp.eq.s32.totalorder %s17, 1
    %p150 = por %p148, %p149
    %p152 = scmp.ne.s32.totalorder %s135, %s151
    %p153 = scmp.eq.s32.totalorder %s17, 0
    %p154 = por %p152, %p153
    %s155 = ssub.s32 %s18, %s37
    %s156 = ssub.s32 %s19, %s33
    %s157 = sor.u32 %s155, %s156
    %p158 = scmp.eq.s32.totalorder %s157, 0
    %s160 = sadd.s32 %s159, 1
    %s161 = scalar_select %p158, %s159, %s160
    %p164 = pneg %p158
    %p165 = scmp.eq.s32.totalorder %s11, 1
    %p166 = por %p164, %p165
    %p167 = scmp.ne.s32.totalorder %s159, %s162
    %p168 = scmp.eq.s32.totalorder %s11, 0
    %p169 = por %p167, %p168
    %p170 = scmp.ne.s32.totalorder %s159, %s162
    %p171 = scmp.eq.s32.totalorder %s16, 1
    %p172 = por %p170, %p171
    %p173 = scmp.ne.s32.totalorder %s162, %s163
    %p174 = scmp.eq.s32.totalorder %s16, 0
    %p175 = por %p173, %p174
    %p176 = scmp.ne.s32.totalorder %s162, %s163
    %p177 = scmp.eq.s32.totalorder %s17, 1
    %p178 = por %p176, %p177
    %p180 = scmp.ne.s32.totalorder %s163, %s179
    %p181 = scmp.eq.s32.totalorder %s17, 0
    %p182 = por %p180, %p181
    %p183 = scmp.le.s32.totalorder 1, %s11
    %p184 = scmp.lt.s32.totalorder %s11, 3
    %p185 = pnand %p183, %p184
    %p186 = pneg %p185
    // Predicated region
    $region9: #{weighted_cross_entropy.1} parent=5 // pred_check
      _
    $region10: #{weighted_cross_entropy.1} parent=5 // pred_check_branch
      %188 = sbr.rel (%p185) target = $region12
    $region11: #{weighted_cross_entropy.1} parent=5 // pred_region
      %s189 = ssub.s32 %s11, 1
      // Predicated region
      $region13: #{weighted_cross_entropy.1} parent=11 // pred_check
        %p190 = pneg %p119
      $region14: #{weighted_cross_entropy.1} parent=11 // pred_check_branch
        %192 = sbr.rel (%p190) target = $region16
      $region15: #{weighted_cross_entropy.1} parent=11 // pred_region
        _
      $region16: #{weighted_cross_entropy.1} parent=11 // pred_fallthru
        _
    $region12: #{weighted_cross_entropy.1} parent=5 // pred_fallthru
      _
    %p193 = scmp.lt.s32.totalorder %s11, 2
    // Predicated region
    $region17: #{weighted_cross_entropy.1} parent=5 // pred_check
      %p194 = pneg %p193
    $region18: #{weighted_cross_entropy.1} parent=5 // pred_check_branch
      %196 = sbr.rel (%p194) target = $region20
    $region19: #{weighted_cross_entropy.1} parent=5 // pred_region
      // Predicated region
      $region21: #{weighted_cross_entropy.1} parent=19 // pred_check
        %p197 = pneg %p58
      $region22: #{weighted_cross_entropy.1} parent=19 // pred_check_branch
        %199 = sbr.rel (%p197) target = $region24
      $region23: #{weighted_cross_entropy.1} parent=19 // pred_region
        %s200 = sadd.s32 %s19, %s20
        %p201 = scmp.lt.s32.totalorder %s200, 0
        %s202 = scalar_select %p201, %s200, 0
        %s203 = smul.u32 2, %s202
        %p204 = scmp.lt.s32.totalorder %s18, 1
        %s205 = scalar_select %p204, %s18, 1
        %p206 = scmp.lt.s32.totalorder %s203, 1
        %s207 = scalar_select %p206, %s203, 1
        %s208 = smul.addr %s205, 4
        %s209 = sadd.s32 %s207, %s208
        %s210 = smul.addr %s209, 8
        %s211 = scalar_lea.vmem %s0, %s210
        %s212 = sadd.s32 %s19, %s20
        %p213 = scmp.lt.s32.totalorder %s212, 0
        %s214 = scalar_select %p213, %s212, 0
        %s215 = smul.u32 2, %s214
      $region24: #{weighted_cross_entropy.1} parent=19 // pred_fallthru
        _
      // Predicated region
      $region25: #{weighted_cross_entropy.1} parent=19 // pred_check
        %p216 = pneg %p92
      $region26: #{weighted_cross_entropy.1} parent=19 // pred_check_branch
        %218 = sbr.rel (%p216) target = $region28
      $region27: #{weighted_cross_entropy.1} parent=19 // pred_region
        %s219 = sadd.s32 %s19, %s20
        %p220 = scmp.lt.s32.totalorder %s219, 0
        %s221 = scalar_select %p220, %s219, 0
        %s222 = smul.u32 2, %s221
        %p223 = scmp.lt.s32.totalorder %s18, 1
        %s224 = scalar_select %p223, %s18, 1
        %p225 = scmp.lt.s32.totalorder %s222, 1
        %s226 = scalar_select %p225, %s222, 1
        %s227 = smul.addr %s224, 2
        %s228 = sadd.s32 %s226, %s227
        %s229 = scalar_lea.vmem %s1, %s228
        %s230 = sadd.s32 %s19, %s20
        %p231 = scmp.lt.s32.totalorder %s230, 0
        %s232 = scalar_select %p231, %s230, 0
        %s233 = smul.u32 2, %s232
      $region28: #{weighted_cross_entropy.1} parent=19 // pred_fallthru
        _
    $region20: #{weighted_cross_entropy.1} parent=5 // pred_fallthru
      _
    %p234 = scmp.le.s32.totalorder 1, %s11
    %p235 = scmp.lt.s32.totalorder %s11, 3
    %p236 = pnand %p234, %p235
    %p237 = pneg %p236
    // Predicated region
    $region29: #{weighted_cross_entropy.1} parent=5 // pred_check
      _
    $region30: #{weighted_cross_entropy.1} parent=5 // pred_check_branch
      %239 = sbr.rel (%p236) target = $region32
    $region31: #{weighted_cross_entropy.1} parent=5 // pred_region
      %s240 = ssub.s32 %s11, 1
      %s241 = sadd.s32 %s22, %s23
      %p242 = scmp.lt.s32.totalorder %s241, 0
      %s243 = scalar_select %p242, %s241, 0
      %s244 = smul.u32 2, %s243
      %p245 = scmp.lt.s32.totalorder %s21, 1
      %s246 = scalar_select %p245, %s21, 1
      %p247 = scmp.lt.s32.totalorder %s244, 1
      %s248 = scalar_select %p247, %s244, 1
      %s249 = smul.addr %s246, 4
      %s250 = sadd.s32 %s248, %s249
      %s251 = smul.addr %s250, 8
      %s252 = scalar_lea.vmem %s0, %s251
      %p253 = pneg %p64
      %p254 = pneg %p61
      %s255 = sadd.s32 %s22, %s23
      %p256 = scmp.lt.s32.totalorder %s255, 0
      %s257 = scalar_select %p256, %s255, 0
      %s258 = smul.u32 2, %s257
      %p259 = scmp.lt.s32.totalorder %s21, 1
      %s260 = scalar_select %p259, %s21, 1
      %p261 = scmp.lt.s32.totalorder %s258, 1
      %s262 = scalar_select %p261, %s258, 1
      %s263 = smul.addr %s260, 2
      %s264 = sadd.s32 %s262, %s263
      %s265 = scalar_lea.vmem %s1, %s264
      %p266 = pneg %p98
      %p267 = pneg %p95
      %p268 = pneg %p119
      %p269 = pneg %p116
      %p270 = pneg %p147
      %p271 = pneg %p144
      %p272 = scmp.lt.s32.totalorder %s21, 1
      %s273 = scalar_select %p272, %s21, 1
      %p274 = scmp.lt.s32.totalorder %s22, 0
      %s275 = scalar_select %p274, %s22, 0
      %s276 = smul.addr %s275, 2
      %s277 = smul.addr %s273, 2
      %s278 = sadd.s32 %s276, %s277
      %s279 = scalar_lea.vmem %s3, %s278
      %p280 = pneg %p175
      %p281 = pneg %p172
      %p282 = scmp.lt.s32.totalorder %s21, 1
      %s283 = scalar_select %p282, %s21, 1
      %p284 = scmp.lt.s32.totalorder %s22, 0
      %s285 = scalar_select %p284, %s22, 0
      %s286 = smul.addr %s285, 2
      %s287 = smul.addr %s283, 2
      %s288 = sadd.s32 %s286, %s287
      %s289 = scalar_lea.vmem %s4, %s288
      %s290 = sadd.s32 %s22, %s23
      %p291 = scmp.lt.s32.totalorder %s290, 0
      %s292 = scalar_select %p291, %s290, 0
      %s293 = smul.u32 2, %s292
      %p294 = scmp.lt.s32.totalorder %s21, 1
      %s295 = scalar_select %p294, %s21, 1
      %p296 = scmp.lt.s32.totalorder %s293, 1
      %s297 = scalar_select %p296, %s293, 1
      %s298 = smul.addr %s295, 4
      %s299 = sadd.s32 %s297, %s298
      %s300 = smul.addr %s299, 8
      %s301 = scalar_lea.vmem %s0, %s300
      %s302 = sadd.s32 %s22, %s23
      %p303 = scmp.lt.s32.totalorder %s302, 0
      %s304 = scalar_select %p303, %s302, 0
      %s305 = smul.u32 2, %s304
      %s306 = sadd.s32 %s22, %s23
      %p307 = scmp.lt.s32.totalorder %s306, 0
      %s308 = scalar_select %p307, %s306, 0
      %s309 = smul.u32 2, %s308
      %p310 = scmp.lt.s32.totalorder %s21, 1
      %s311 = scalar_select %p310, %s21, 1
      %p312 = scmp.lt.s32.totalorder %s309, 1
      %s313 = scalar_select %p312, %s309, 1
      %s314 = smul.addr %s311, 2
      %s315 = sadd.s32 %s313, %s314
      %s316 = scalar_lea.vmem %s1, %s315
      %s317 = sadd.s32 %s22, %s23
      %p318 = scmp.lt.s32.totalorder %s317, 0
      %s319 = scalar_select %p318, %s317, 0
      %s320 = smul.u32 2, %s319
      %p321 = scmp.lt.s32.totalorder %s21, 1
      %s322 = scalar_select %p321, %s21, 1
      %p323 = scmp.lt.s32.totalorder %s22, 0
      %s324 = scalar_select %p323, %s22, 0
      %s325 = smul.addr %s324, 2
      %s326 = smul.addr %s322, 2
      %s327 = sadd.s32 %s325, %s326
      %s328 = scalar_lea.vmem %s3, %s327
      %p329 = scmp.lt.s32.totalorder %s21, 1
      %s330 = scalar_select %p329, %s21, 1
      %p331 = scmp.lt.s32.totalorder %s22, 0
      %s332 = scalar_select %p331, %s22, 0
      %s333 = smul.addr %s332, 2
      %s334 = smul.addr %s330, 2
      %s335 = sadd.s32 %s333, %s334
      %s336 = scalar_lea.vmem %s4, %s335
      %p337 = scmp.eq.s32.totalorder %s23, 0
      // Predicated region
      $region33: #{weighted_cross_entropy.1} parent=31 // pred_check
        %p338 = pneg %p337
      $region34: #{weighted_cross_entropy.1} parent=31 // pred_check_branch
        %340 = sbr.rel (%p338) target = $region36
      $region35: #{weighted_cross_entropy.1} parent=31 // pred_region
        %v341 = vlaneseq
        %vm342 = vcmp.ge.s32.totalorder %v341, 0
        %vm343 = vcmp.lt.s32.totalorder %v341, 256
        %vm344 = vmand %vm342, %vm343
        %345 = vst.msk [vmem:[%s328] sm:$0x3] %vm344, 0.0
        %346 = vst.msk [vmem:[%s336] sm:$0x3] %vm344, 0.0
      $region36: #{weighted_cross_entropy.1} parent=31 // pred_fallthru
        _
      %v347 = vld [vmem:[%s301] sm:$0xff]
      %v348 = vld [vmem:[%s301 + $0x8] sm:$0xff]
      %v349 = vld [vmem:[%s301 + $0x10] sm:$0x3]
      %v350 = vld [vmem:[%s301 + $0x18] sm:$0x3]
      %v351 = vld [vmem:[%s316] sm:$0x3]
      %v352 = vld [vmem:[%s2] sm:$0xff]
      %v353 = vld [vmem:[%s2 + $0x8] sm:$0x3]
      %vm354 = vcmask 1041408
      %v355 = vsel %vm354, %v349, -inf
      %v356 = vmax.f32 %v347, %v355
      %v357 = vrot.slane %v356, 4
      %v358 = vmax.f32 %v356, %v357
      %v359 = vrot.slane %v358, 2
      %v360 = vmax.f32 %v358, %v359
      %v361 = vrot.slane %v360, 1
      %v362 = vmax.f32 %v360, %v361
      %v363 = vsel %vm354, %v350, -inf
      %v364 = vmax.f32 %v348, %v363
      %v365 = vrot.slane %v364, 4
      %v366 = vmax.f32 %v364, %v365
      %v367 = vrot.slane %v366, 2
      %v368 = vmax.f32 %v366, %v367
      %v369 = vrot.slane %v368, 1
      %v370 = vmax.f32 %v368, %v369
      %v371 = vsub.f32 %v347, %v362
      %v372 = vsub.f32 %v348, %v370
      %v373 = vsub.f32 %v349, %v362
      %v374 = vsub.f32 %v350, %v370
      %v375 = vmul.f32 %v371, 1.442695
      %v376 = vpow.pop %v375
      %v377 = vmul.f32 %v372, 1.442695
      %v378 = vpow.pop %v377
      %v379 = vmul.f32 %v373, 1.442695
      %v380 = vpow.pop %v379
      %v381 = vmul.f32 %v374, 1.442695
      %v382 = vpow.pop %v381
      %v383 = vsel %vm354, %v380, 0.0
      %v384 = vadd.f32 %v376, %v383
      %v385 = vrot.slane %v384, 4
      %v386 = vadd.f32 %v384, %v385
      %v387 = vrot.slane %v386, 2
      %v388 = vadd.f32 %v386, %v387
      %v389 = vrot.slane %v388, 1
      %v390 = vadd.f32 %v388, %v389
      %v391 = vsel %vm354, %v382, 0.0
      %v392 = vadd.f32 %v378, %v391
      %v393 = vrot.slane %v392, 4
      %v394 = vadd.f32 %v392, %v393
      %v395 = vrot.slane %v394, 2
      %v396 = vadd.f32 %v394, %v395
      %v397 = vrot.slane %v396, 1
      %v398 = vadd.f32 %v396, %v397
      %v399 = vlog2.pop %v390
      %v400 = vmul.f32 %v399, 0.6931472
      %v401 = vlog2.pop %v398
      %v402 = vmul.f32 %v401, 0.6931472
      %v403 = vadd.f32 %v362, %v400
      %v404 = vadd.f32 %v370, %v402
      %v405 = vlaneseq
      %v406 = vshrl.u32 %v405, 7
      %v407 = vadd.s32 %v406, 8
      %v408 = vlaneseq
      %v409 = vshrl.u32 %v408, 7
      %v410 = vsub.s32 0, %v409
      %v411 = vrot.slane %v351, %v410
      %v412 = vlaneseq
      %v413 = vshrl.u32 %v412, 7
      %v414 = vsub.s32 1, %v413
      %v415 = vrot.slane %v351, %v414
      %vm416 = vcmp.eq.s32.totalorder %v406, %v411
      %vm417 = vcmp.eq.s32.totalorder %v406, %v415
      %vm418 = vcmp.eq.s32.totalorder %v407, %v411
      %vm419 = vcmp.eq.s32.totalorder %v407, %v415
      %v420 = vsel %vm416, %v347, 0.0
      %v421 = vsel %vm417, %v348, 0.0
      %v422 = vsel %vm418, %v349, 0.0
      %v423 = vsel %vm419, %v350, 0.0
      %v424 = vsel %vm354, %v422, 0.0
      %v425 = vadd.f32 %v420, %v424
      %v426 = vrot.slane %v425, 4
      %v427 = vadd.f32 %v425, %v426
      %v428 = vrot.slane %v427, 2
      %v429 = vadd.f32 %v427, %v428
      %v430 = vrot.slane %v429, 1
      %v431 = vadd.f32 %v429, %v430
      %v432 = vsel %vm354, %v423, 0.0
      %v433 = vadd.f32 %v421, %v432
      %v434 = vrot.slane %v433, 4
      %v435 = vadd.f32 %v433, %v434
      %v436 = vrot.slane %v435, 2
      %v437 = vadd.f32 %v435, %v436
      %v438 = vrot.slane %v437, 1
      %v439 = vadd.f32 %v437, %v438
      %441 = vset.pattern.permute.xlu0 0
      %442 = vperm.xlu0 %441, %v352
      %v443 = vpop.permute.xlu0 %442
      %446 = vset.pattern.permute.xlu0 0
      %447 = vperm.xlu0 %446, %v353
      %v448 = vpop.permute.xlu0 %447
      %v450 = vsel %vm416, %v443, 0.0
      %v451 = vsel %vm417, %v443, 0.0
      %v452 = vsel %vm418, %v448, 0.0
      %v453 = vsel %vm419, %v448, 0.0
      %v454 = vsel %vm354, %v452, 0.0
      %v455 = vadd.f32 %v450, %v454
      %v456 = vrot.slane %v455, 4
      %v457 = vadd.f32 %v455, %v456
      %v458 = vrot.slane %v457, 2
      %v459 = vadd.f32 %v457, %v458
      %v460 = vrot.slane %v459, 1
      %v461 = vadd.f32 %v459, %v460
      %v462 = vsel %vm354, %v453, 0.0
      %v463 = vadd.f32 %v451, %v462
      %v464 = vrot.slane %v463, 4
      %v465 = vadd.f32 %v463, %v464
      %v466 = vrot.slane %v465, 2
      %v467 = vadd.f32 %v465, %v466
      %v468 = vrot.slane %v467, 1
      %v469 = vadd.f32 %v467, %v468
      %v470 = vsub.f32 %v403, %v431
      %v471 = vsub.f32 %v404, %v439
      %v472 = vmul.f32 %v461, %v470
      %v473 = vmul.f32 %v469, %v471
      %v474 = vld [vmem:[%s328] sm:$0x3]
      %v477 = vcombine.low %v472, %v473
      %v479 = vunpack.c.l.s4 1966171168
      %v480 = vunpack.c.0.s8 %v479
      %v481 = vlaneseq
      %v482 = vshrl.u32 %v481, 7
      %v483 = vsub.s32 %v480, %v482
      %v484 = vrot.slane %v477, %v483
      %v486 = vunpack.c.l.s4 1966171168
      %v487 = vunpack.c.0.s8 %v486
      %v488 = vlaneseq
      %v489 = vshrl.u32 %v488, 7
      %v490 = vsub.s32 %v487, %v489
      %v491 = vrot.slane %v484, %v490
      %v493 = vadd.f32 %v474, %v491
      %v494 = vlaneseq
      %vm495 = vcmp.ge.s32.totalorder %v494, 0
      %vm496 = vcmp.lt.s32.totalorder %v494, 256
      %vm497 = vmand %vm495, %vm496
      %498 = vst.msk [vmem:[%s328] sm:$0x3] %vm497, %v493
      %v499 = vld [vmem:[%s336] sm:$0x3]
      %v502 = vcombine.low %v461, %v469
      %v504 = vunpack.c.l.s4 1966171168
      %v505 = vunpack.c.0.s8 %v504
      %v506 = vlaneseq
      %v507 = vshrl.u32 %v506, 7
      %v508 = vsub.s32 %v505, %v507
      %v509 = vrot.slane %v502, %v508
      %v511 = vunpack.c.l.s4 1966171168
      %v512 = vunpack.c.0.s8 %v511
      %v513 = vlaneseq
      %v514 = vshrl.u32 %v513, 7
      %v515 = vsub.s32 %v512, %v514
      %v516 = vrot.slane %v509, %v515
      %v518 = vadd.f32 %v499, %v516
      %519 = vst.msk [vmem:[%s336] sm:$0x3] %vm497, %v518
      %p520 = scmp.lt.s32.totalorder %s21, 1
      %s521 = scalar_select %p520, %s21, 1
      %p522 = scmp.lt.s32.totalorder %s22, 0
      %s523 = scalar_select %p522, %s22, 0
      %s524 = smul.addr %s523, 2
      %s525 = smul.addr %s521, 2
      %s526 = sadd.s32 %s524, %s525
      %s527 = scalar_lea.vmem %s3, %s526
      %p528 = scmp.lt.s32.totalorder %s21, 1
      %s529 = scalar_select %p528, %s21, 1
      %p530 = scmp.lt.s32.totalorder %s22, 0
      %s531 = scalar_select %p530, %s22, 0
      %s532 = smul.addr %s531, 2
      %s533 = smul.addr %s529, 2
      %s534 = sadd.s32 %s532, %s533
      %s535 = scalar_lea.vmem %s4, %s534
      // Predicated region
      $region37: #{weighted_cross_entropy.1} parent=31 // pred_check
        %p536 = pneg %p144
      $region38: #{weighted_cross_entropy.1} parent=31 // pred_check_branch
        %538 = sbr.rel (%p536) target = $region40
      $region39: #{weighted_cross_entropy.1} parent=31 // pred_region
        _
      $region40: #{weighted_cross_entropy.1} parent=31 // pred_fallthru
        _
      // Predicated region
      $region41: #{weighted_cross_entropy.1} parent=31 // pred_check
        %p539 = pneg %p172
      $region42: #{weighted_cross_entropy.1} parent=31 // pred_check_branch
        %541 = sbr.rel (%p539) target = $region44
      $region43: #{weighted_cross_entropy.1} parent=31 // pred_region
        _
      $region44: #{weighted_cross_entropy.1} parent=31 // pred_fallthru
        _
    $region32: #{weighted_cross_entropy.1} parent=5 // pred_fallthru
      _
    %p542 = scmp.le.s32.totalorder 2, %s11
    // Predicated region
    $region45: #{weighted_cross_entropy.1} parent=5 // pred_check
      %p543 = pneg %p542
    $region46: #{weighted_cross_entropy.1} parent=5 // pred_check_branch
      %545 = sbr.rel (%p543) target = $region48
    $region47: #{weighted_cross_entropy.1} parent=5 // pred_region
      %s546 = ssub.s32 %s11, 2
      // Predicated region
      $region49: #{weighted_cross_entropy.1} parent=47 // pred_check
        %p547 = pneg %p150
      $region50: #{weighted_cross_entropy.1} parent=47 // pred_check_branch
        %549 = sbr.rel (%p547) target = $region52
      $region51: #{weighted_cross_entropy.1} parent=47 // pred_region
        %p550 = scmp.lt.s32.totalorder %s24, 1
        %s551 = scalar_select %p550, %s24, 1
        %p552 = scmp.lt.s32.totalorder %s25, 0
        %s553 = scalar_select %p552, %s25, 0
        %s554 = smul.addr %s553, 2
        %s555 = smul.addr %s551, 2
        %s556 = sadd.s32 %s554, %s555
        %s557 = scalar_lea.vmem %s3, %s556
      $region52: #{weighted_cross_entropy.1} parent=47 // pred_fallthru
        _
      // Predicated region
      $region53: #{weighted_cross_entropy.1} parent=47 // pred_check
        %p558 = pneg %p178
      $region54: #{weighted_cross_entropy.1} parent=47 // pred_check_branch
        %560 = sbr.rel (%p558) target = $region56
      $region55: #{weighted_cross_entropy.1} parent=47 // pred_region
        %p561 = scmp.lt.s32.totalorder %s24, 1
        %s562 = scalar_select %p561, %s24, 1
        %p563 = scmp.lt.s32.totalorder %s25, 0
        %s564 = scalar_select %p563, %s25, 0
        %s565 = smul.addr %s564, 2
        %s566 = smul.addr %s562, 2
        %s567 = sadd.s32 %s565, %s566
        %s568 = scalar_lea.vmem %s4, %s567
      $region56: #{weighted_cross_entropy.1} parent=47 // pred_fallthru
        _
    $region48: #{weighted_cross_entropy.1} parent=5 // pred_fallthru
      _
  $region6: #{weighted_cross_entropy.1} parent=0 // loop_footer
    %s15 = sadd.s32 1, %s11
  $region7: #{weighted_cross_entropy.1} parent=0 // loop_footer_branch
    %10 = sbr.rel target = $region3
  $region8: #{weighted_cross_entropy.1} parent=0 // loop_exit
    _

</llo_original>
